<compile_context>
chip_gen: v7x
topology: tpu7x:2x2x1
jax: 0.10.0
libtpu: 0.0.40
codegen_flags: <defaults>
</compile_context>

<pallas_src>
import functools

import jax
import jax.numpy as jnp
from jax.experimental import pallas as pl
from jax.experimental.pallas import tpu as pltpu


def datanet_kernel(alpha_sm, inv_alpha_sm,
                   fr_re_ref, fr_im_ref,
                   fb_re_ref, fb_im_ref,
                   fbc_re_ref, fbc_im_ref,
                   f2b_re_ref, f2b_im_ref,
                   fx_re_ref, fx_im_ref,
                   *, sf, Hs, Ws):
    """One (n, c) spectral plane of shape (H, W) = (sf*Hs, sf*Ws)."""
    n = pl.program_id(0)
    a = alpha_sm[n]          # alpha for this batch element (SMEM scalar)
    inv_a = inv_alpha_sm[n]  # 1/alpha (precomputed in the wrapper)

    frr = fr_re_ref[0, 0]    # (H, W)
    fri = fr_im_ref[0, 0]
    fbr = fb_re_ref[0, 0]
    fbi = fb_im_ref[0, 0]

    # x1 = cmul(FB, FR)
    x1r = fbr * frr - fbi * fri
    x1i = fbr * fri + fbi * frr

    f2r = f2b_re_ref[0, 0]
    f2i = f2b_im_ref[0, 0]

    # splits(., sf) + mean over the sf*sf blocks == mean of the sf x sf
    # contiguous (Hs, Ws) sub-blocks of the plane.
    acc_x1r = jnp.zeros((Hs, Ws), jnp.float32)
    acc_x1i = jnp.zeros((Hs, Ws), jnp.float32)
    acc_f2r = jnp.zeros((Hs, Ws), jnp.float32)
    acc_f2i = jnp.zeros((Hs, Ws), jnp.float32)
    for k in range(sf):
        hsl = slice(k * Hs, (k + 1) * Hs)
        for j in range(sf):
            wsl = slice(j * Ws, (j + 1) * Ws)
            acc_x1r = acc_x1r + x1r[hsl, wsl]
            acc_x1i = acc_x1i + x1i[hsl, wsl]
            acc_f2r = acc_f2r + f2r[hsl, wsl]
            acc_f2i = acc_f2i + f2i[hsl, wsl]
    scale = 1.0 / float(sf * sf)
    fbr_r = acc_x1r * scale          # FBR (real)
    fbr_i = acc_x1i * scale          # FBR (imag)

    # csum(invW, alpha): alpha is added to the real part only.
    dr = acc_f2r * scale + a
    di = acc_f2i * scale
    d2 = dr * dr + di * di

    # invWBR = cdiv(FBR, invW + alpha)
    wr = (fbr_r * dr + fbr_i * di) / d2
    wi = (fbr_i * dr - fbr_r * di) / d2

    # FX = (FR - cmul(FBC, tile_sf(invWBR))) / alpha, written block-by-block
    # (tile_sf(invWBR)[h, w] == invWBR[h % Hs, w % Ws]).
    for k in range(sf):
        hsl = slice(k * Hs, (k + 1) * Hs)
        for j in range(sf):
            wsl = slice(j * Ws, (j + 1) * Ws)
            cr = fbc_re_ref[0, 0, hsl, wsl]
            ci = fbc_im_ref[0, 0, hsl, wsl]
            num_r = cr * wr - ci * wi
            num_i = cr * wi + ci * wr
            fx_re_ref[0, 0, hsl, wsl] = (frr[hsl, wsl] - num_r) * inv_a
            fx_im_ref[0, 0, hsl, wsl] = (fri[hsl, wsl] - num_i) * inv_a


@functools.partial(jax.jit, static_argnames=("sf",))
def datanet_forward(x, FB, FBC, F2B, FBFy, alpha, sf):
    """DataNet.forward.

    x:    (N, C, H, W) real
    FB, FBC, F2B: (1|N, 1|C, H, W, 2) stacked-real complex (torch.rfft layout)
    FBFy: (N, C, H, W, 2)
    alpha: (N, 1, 1, 1)
    returns Xest: (N, C, H, W) real
    """
    f32 = jnp.float32
    N, C, H, W = x.shape
    assert H % sf == 0 and W % sf == 0
    Hs, Ws = H // sf, W // sf

    alpha_n = alpha.reshape(N).astype(f32)
    inv_alpha_n = (1.0 / alpha_n).astype(f32)

    # TODO(synk): 2-D FFT/IFFT have no Pallas TPU equivalent; they run as XLA
    # ops here, everything between them is fused into the Pallas kernel.
    Fx = jnp.fft.fft2(alpha.astype(f32) * x.astype(f32), axes=(-2, -1))
    FR = (FBFy[..., 0].astype(f32) + 1j * FBFy[..., 1].astype(f32)) + Fx
    fr_re = jnp.real(FR).astype(f32)
    fr_im = jnp.imag(FR).astype(f32)

    fb_re, fb_im = FB[..., 0].astype(f32), FB[..., 1].astype(f32)
    fbc_re, fbc_im = FBC[..., 0].astype(f32), FBC[..., 1].astype(f32)
    f2b_re, f2b_im = F2B[..., 0].astype(f32), F2B[..., 1].astype(f32)

    full_spec = pl.BlockSpec((1, 1, H, W), lambda n, c, *_: (n, c, 0, 0))

    def bcast_spec(arr):
        # Handle (1,1,H,W) filter spectra without materializing an (N,C,H,W)
        # broadcast in HBM: resolve the broadcast at index_map time.
        nb, cb = arr.shape[0], arr.shape[1]

        def imap(n, c, *_):
            return (n if nb > 1 else 0, c if cb > 1 else 0, 0, 0)

        return pl.BlockSpec((1, 1, H, W), imap)

    kernel = functools.partial(datanet_kernel, sf=sf, Hs=Hs, Ws=Ws)

    fx_re, fx_im = pl.pallas_call(
        kernel,
        out_shape=(jax.ShapeDtypeStruct((N, C, H, W), f32),
                   jax.ShapeDtypeStruct((N, C, H, W), f32)),
        grid_spec=pltpu.PrefetchScalarGridSpec(
            num_scalar_prefetch=2,
            grid=(N, C),
            in_specs=[
                full_spec, full_spec,                    # FR  re / im
                bcast_spec(fb_re), bcast_spec(fb_im),    # FB  re / im
                bcast_spec(fbc_re), bcast_spec(fbc_im),  # FBC re / im
                bcast_spec(f2b_re), bcast_spec(f2b_im),  # F2B re / im
            ],
            out_specs=(full_spec, full_spec),
        ),
        compiler_params=pltpu.CompilerParams(
            dimension_semantics=("parallel", "parallel")),
    )(alpha_n, inv_alpha_n,
      fr_re, fr_im, fb_re, fb_im, fbc_re, fbc_im, f2b_re, f2b_im)

    FX = fx_re + 1j * fx_im
    Xest = jnp.real(jnp.fft.ifft2(FX, axes=(-2, -1)))
    return Xest.astype(x.dtype)


def datanet_reference(x, FB, FBC, F2B, FBFy, alpha, sf):
    """Pure-JAX mirror of the PyTorch DataNet.forward (no Pallas)."""
    f32 = jnp.float32

    def c2j(t):
        return t[..., 0].astype(f32) + 1j * t[..., 1].astype(f32)

    N, C, H, W = x.shape
    Hs, Ws = H // sf, W // sf
    FBc, FBCc, F2Bc, FBFyc = c2j(FB), c2j(FBC), c2j(F2B), c2j(FBFy)
    alpha = alpha.astype(f32)

    FR = FBFyc + jnp.fft.fft2(alpha * x.astype(f32), axes=(-2, -1))
    x1 = FBc * FR

    def block_mean(t):
        t = t.reshape(t.shape[:-2] + (sf, Hs, sf, Ws))
        return jnp.mean(t, axis=(-4, -2))

    FBR = block_mean(x1)
    invW = block_mean(F2Bc)
    den = invW + alpha                        # csum: alpha on the real part
    d2 = jnp.real(den) ** 2 + jnp.imag(den) ** 2
    invWBR = (FBR * jnp.conj(den)) / d2       # cdiv
    FCBinvWBR = FBCc * jnp.tile(invWBR, (1, 1, sf, sf))
    FX = (FR - FCBinvWBR) / alpha
    Xest = jnp.real(jnp.fft.ifft2(FX, axes=(-2, -1)))
    return Xest.astype(x.dtype)


if __name__ == "__main__":
    key = jax.random.PRNGKey(0)
    kx, kk, ky, ka = jax.random.split(key, 4)

    # Small shapes consistent with USRNet's DataNet usage.
    N, C, H, W, sf = 2, 3, 16, 16, 2

    x = jax.random.normal(kx, (N, C, H, W), dtype=jnp.float32)

    # Build filter spectra from a normalized PSF (like USRNet's p2o).
    psf = jax.random.uniform(kk, (5, 5), jnp.float32)
    psf = psf / jnp.sum(psf)
    otf = jnp.zeros((H, W), jnp.float32).at[:5, :5].set(psf)
    otf = jnp.roll(otf, shift=(-2, -2), axis=(0, 1))
    FBc = jnp.fft.fft2(otf)[None, None]                  # (1,1,H,W) complex
    FBCc = jnp.conj(FBc)
    F2Bc = (jnp.abs(FBc) ** 2).astype(jnp.complex64)
    y = jax.random.normal(ky, (N, C, H, W), dtype=jnp.float32)
    FBFyc = FBCc * jnp.fft.fft2(y, axes=(-2, -1))

    def c2s(z):  # complex -> (..., 2) stacked-real (torch.rfft layout)
        return jnp.stack([jnp.real(z), jnp.imag(z)], axis=-1).astype(jnp.float32)

    FB, FBC, F2B, FBFy = c2s(FBc), c2s(FBCc), c2s(F2Bc), c2s(FBFyc)
    alpha = jax.random.uniform(ka, (N, 1, 1, 1), jnp.float32,
                               minval=0.1, maxval=1.0)

    out = datanet_forward(x, FB, FBC, F2B, FBFy, alpha, sf=sf)
    out = jax.block_until_ready(out)

    ref = datanet_reference(x, FB, FBC, F2B, FBFy, alpha, sf)
    assert out.shape == (N, C, H, W), out.shape
    err = float(jnp.max(jnp.abs(out - ref)))
    assert err < 1e-3, err

    print("KERNEL_OK")
</pallas_src>

<mosaic_0001>
module attributes {stable_mosaic.version = 11 : i64} {
  func.func @datanet_kernel(%arg0: i32, %arg1: i32, %arg2: memref<2xf32, #tpu.memory_space<smem>>, %arg3: memref<2xf32, #tpu.memory_space<smem>>, %arg4: memref<1x1x16x16xf32, #tpu.memory_space<vmem>>, %arg5: memref<1x1x16x16xf32, #tpu.memory_space<vmem>>, %arg6: memref<1x1x16x16xf32, #tpu.memory_space<vmem>>, %arg7: memref<1x1x16x16xf32, #tpu.memory_space<vmem>>, %arg8: memref<1x1x16x16xf32, #tpu.memory_space<vmem>>, %arg9: memref<1x1x16x16xf32, #tpu.memory_space<vmem>>, %arg10: memref<1x1x16x16xf32, #tpu.memory_space<vmem>>, %arg11: memref<1x1x16x16xf32, #tpu.memory_space<vmem>>, %arg12: memref<1x1x16x16xf32, #tpu.memory_space<vmem>>, %arg13: memref<1x1x16x16xf32, #tpu.memory_space<vmem>>) attributes {dimension_semantics = [#tpu.dimension_semantics<parallel>, #tpu.dimension_semantics<parallel>], iteration_bounds = array<i64: 2, 3>, scalar_prefetch = 2 : i64, scratch_operands = 0 : i64, tpu.core_type = #tpu.core_type<tc>, window_params = [{transform_indices = @transform_0, window_bounds = array<i64: 1, 1, 16, 16>}, {transform_indices = @transform_1, window_bounds = array<i64: 1, 1, 16, 16>}, {pipeline_mode = #tpu.pipeline_mode<synchronous>, transform_indices = @transform_2, window_bounds = array<i64: 1, 1, 16, 16>}, {pipeline_mode = #tpu.pipeline_mode<synchronous>, transform_indices = @transform_3, window_bounds = array<i64: 1, 1, 16, 16>}, {pipeline_mode = #tpu.pipeline_mode<synchronous>, transform_indices = @transform_4, window_bounds = array<i64: 1, 1, 16, 16>}, {pipeline_mode = #tpu.pipeline_mode<synchronous>, transform_indices = @transform_5, window_bounds = array<i64: 1, 1, 16, 16>}, {pipeline_mode = #tpu.pipeline_mode<synchronous>, transform_indices = @transform_6, window_bounds = array<i64: 1, 1, 16, 16>}, {pipeline_mode = #tpu.pipeline_mode<synchronous>, transform_indices = @transform_7, window_bounds = array<i64: 1, 1, 16, 16>}, {transform_indices = @transform_8, window_bounds = array<i64: 1, 1, 16, 16>}, {transform_indices = @transform_9, window_bounds = array<i64: 1, 1, 16, 16>}]} {
    %0 = arith.index_cast %arg0 : i32 to index
    %1 = memref.load %arg2[%0] : memref<2xf32, #tpu.memory_space<smem>>
    %2 = arith.index_cast %arg0 : i32 to index
    %3 = memref.load %arg3[%2] : memref<2xf32, #tpu.memory_space<smem>>
    %c0 = arith.constant 0 : index
    %c0_0 = arith.constant 0 : index
    %c0_1 = arith.constant 0 : index
    %c0_2 = arith.constant 0 : index
    %4 = vector.load %arg4[%c0, %c0_0, %c0_1, %c0_2] : memref<1x1x16x16xf32, #tpu.memory_space<vmem>>, vector<1x1x16x16xf32>
    %5 = vector.shape_cast %4 : vector<1x1x16x16xf32> to vector<16x16xf32>
    %c0_3 = arith.constant 0 : index
    %c0_4 = arith.constant 0 : index
    %c0_5 = arith.constant 0 : index
    %c0_6 = arith.constant 0 : index
    %6 = vector.load %arg5[%c0_3, %c0_4, %c0_5, %c0_6] : memref<1x1x16x16xf32, #tpu.memory_space<vmem>>, vector<1x1x16x16xf32>
    %7 = vector.shape_cast %6 : vector<1x1x16x16xf32> to vector<16x16xf32>
    %c0_7 = arith.constant 0 : index
    %c0_8 = arith.constant 0 : index
    %c0_9 = arith.constant 0 : index
    %c0_10 = arith.constant 0 : index
    %8 = vector.load %arg6[%c0_7, %c0_8, %c0_9, %c0_10] : memref<1x1x16x16xf32, #tpu.memory_space<vmem>>, vector<1x1x16x16xf32>
    %9 = vector.shape_cast %8 : vector<1x1x16x16xf32> to vector<16x16xf32>
    %c0_11 = arith.constant 0 : index
    %c0_12 = arith.constant 0 : index
    %c0_13 = arith.constant 0 : index
    %c0_14 = arith.constant 0 : index
    %10 = vector.load %arg7[%c0_11, %c0_12, %c0_13, %c0_14] : memref<1x1x16x16xf32, #tpu.memory_space<vmem>>, vector<1x1x16x16xf32>
    %11 = vector.shape_cast %10 : vector<1x1x16x16xf32> to vector<16x16xf32>
    %12 = arith.mulf %9, %5 : vector<16x16xf32>
    %13 = arith.mulf %11, %7 : vector<16x16xf32>
    %14 = arith.subf %12, %13 : vector<16x16xf32>
    %15 = arith.mulf %9, %7 : vector<16x16xf32>
    %16 = arith.mulf %11, %5 : vector<16x16xf32>
    %17 = arith.addf %15, %16 : vector<16x16xf32>
    %c0_15 = arith.constant 0 : index
    %c0_16 = arith.constant 0 : index
    %c0_17 = arith.constant 0 : index
    %c0_18 = arith.constant 0 : index
    %18 = vector.load %arg10[%c0_15, %c0_16, %c0_17, %c0_18] : memref<1x1x16x16xf32, #tpu.memory_space<vmem>>, vector<1x1x16x16xf32>
    %19 = vector.shape_cast %18 : vector<1x1x16x16xf32> to vector<16x16xf32>
    %c0_19 = arith.constant 0 : index
    %c0_20 = arith.constant 0 : index
    %c0_21 = arith.constant 0 : index
    %c0_22 = arith.constant 0 : index
    %20 = vector.load %arg11[%c0_19, %c0_20, %c0_21, %c0_22] : memref<1x1x16x16xf32, #tpu.memory_space<vmem>>, vector<1x1x16x16xf32>
    %21 = vector.shape_cast %20 : vector<1x1x16x16xf32> to vector<16x16xf32>
    %cst = arith.constant 0.000000e+00 : f32
    %22 = vector.broadcast %cst : f32 to vector<8x8xf32>
    %cst_23 = arith.constant 0.000000e+00 : f32
    %23 = vector.broadcast %cst_23 : f32 to vector<8x8xf32>
    %cst_24 = arith.constant 0.000000e+00 : f32
    %24 = vector.broadcast %cst_24 : f32 to vector<8x8xf32>
    %cst_25 = arith.constant 0.000000e+00 : f32
    %25 = vector.broadcast %cst_25 : f32 to vector<8x8xf32>
    %26 = vector.extract_strided_slice %14 {offsets = [0, 0], sizes = [8, 8], strides = [1, 1]} : vector<16x16xf32> to vector<8x8xf32>
    %27 = arith.addf %22, %26 : vector<8x8xf32>
    %28 = vector.extract_strided_slice %17 {offsets = [0, 0], sizes = [8, 8], strides = [1, 1]} : vector<16x16xf32> to vector<8x8xf32>
    %29 = arith.addf %23, %28 : vector<8x8xf32>
    %30 = vector.extract_strided_slice %19 {offsets = [0, 0], sizes = [8, 8], strides = [1, 1]} : vector<16x16xf32> to vector<8x8xf32>
    %31 = arith.addf %24, %30 : vector<8x8xf32>
    %32 = vector.extract_strided_slice %21 {offsets = [0, 0], sizes = [8, 8], strides = [1, 1]} : vector<16x16xf32> to vector<8x8xf32>
    %33 = arith.addf %25, %32 : vector<8x8xf32>
    %34 = vector.extract_strided_slice %14 {offsets = [0, 8], sizes = [8, 8], strides = [1, 1]} : vector<16x16xf32> to vector<8x8xf32>
    %35 = arith.addf %27, %34 : vector<8x8xf32>
    %36 = vector.extract_strided_slice %17 {offsets = [0, 8], sizes = [8, 8], strides = [1, 1]} : vector<16x16xf32> to vector<8x8xf32>
    %37 = arith.addf %29, %36 : vector<8x8xf32>
    %38 = vector.extract_strided_slice %19 {offsets = [0, 8], sizes = [8, 8], strides = [1, 1]} : vector<16x16xf32> to vector<8x8xf32>
    %39 = arith.addf %31, %38 : vector<8x8xf32>
    %40 = vector.extract_strided_slice %21 {offsets = [0, 8], sizes = [8, 8], strides = [1, 1]} : vector<16x16xf32> to vector<8x8xf32>
    %41 = arith.addf %33, %40 : vector<8x8xf32>
    %42 = vector.extract_strided_slice %14 {offsets = [8, 0], sizes = [8, 8], strides = [1, 1]} : vector<16x16xf32> to vector<8x8xf32>
    %43 = arith.addf %35, %42 : vector<8x8xf32>
    %44 = vector.extract_strided_slice %17 {offsets = [8, 0], sizes = [8, 8], strides = [1, 1]} : vector<16x16xf32> to vector<8x8xf32>
    %45 = arith.addf %37, %44 : vector<8x8xf32>
    %46 = vector.extract_strided_slice %19 {offsets = [8, 0], sizes = [8, 8], strides = [1, 1]} : vector<16x16xf32> to vector<8x8xf32>
    %47 = arith.addf %39, %46 : vector<8x8xf32>
    %48 = vector.extract_strided_slice %21 {offsets = [8, 0], sizes = [8, 8], strides = [1, 1]} : vector<16x16xf32> to vector<8x8xf32>
    %49 = arith.addf %41, %48 : vector<8x8xf32>
    %50 = vector.extract_strided_slice %14 {offsets = [8, 8], sizes = [8, 8], strides = [1, 1]} : vector<16x16xf32> to vector<8x8xf32>
    %51 = arith.addf %43, %50 : vector<8x8xf32>
    %52 = vector.extract_strided_slice %17 {offsets = [8, 8], sizes = [8, 8], strides = [1, 1]} : vector<16x16xf32> to vector<8x8xf32>
    %53 = arith.addf %45, %52 : vector<8x8xf32>
    %54 = vector.extract_strided_slice %19 {offsets = [8, 8], sizes = [8, 8], strides = [1, 1]} : vector<16x16xf32> to vector<8x8xf32>
    %55 = arith.addf %47, %54 : vector<8x8xf32>
    %56 = vector.extract_strided_slice %21 {offsets = [8, 8], sizes = [8, 8], strides = [1, 1]} : vector<16x16xf32> to vector<8x8xf32>
    %57 = arith.addf %49, %56 : vector<8x8xf32>
    %cst_26 = arith.constant 2.500000e-01 : f32
    %58 = vector.broadcast %cst_26 : f32 to vector<8x8xf32>
    %59 = arith.mulf %51, %58 : vector<8x8xf32>
    %cst_27 = arith.constant 2.500000e-01 : f32
    %60 = vector.broadcast %cst_27 : f32 to vector<8x8xf32>
    %61 = arith.mulf %53, %60 : vector<8x8xf32>
    %cst_28 = arith.constant 2.500000e-01 : f32
    %62 = vector.broadcast %cst_28 : f32 to vector<8x8xf32>
    %63 = arith.mulf %55, %62 : vector<8x8xf32>
    %64 = vector.broadcast %1 : f32 to vector<8x8xf32>
    %65 = arith.addf %63, %64 : vector<8x8xf32>
    %cst_29 = arith.constant 2.500000e-01 : f32
    %66 = vector.broadcast %cst_29 : f32 to vector<8x8xf32>
    %67 = arith.mulf %57, %66 : vector<8x8xf32>
    %68 = arith.mulf %65, %65 : vector<8x8xf32>
    %69 = arith.mulf %67, %67 : vector<8x8xf32>
    %70 = arith.addf %68, %69 : vector<8x8xf32>
    %71 = arith.mulf %59, %65 : vector<8x8xf32>
    %72 = arith.mulf %61, %67 : vector<8x8xf32>
    %73 = arith.addf %71, %72 : vector<8x8xf32>
    %74 = arith.divf %73, %70 : vector<8x8xf32>
    %75 = arith.mulf %61, %65 : vector<8x8xf32>
    %76 = arith.mulf %59, %67 : vector<8x8xf32>
    %77 = arith.subf %75, %76 : vector<8x8xf32>
    %78 = arith.divf %77, %70 : vector<8x8xf32>
    %c0_30 = arith.constant 0 : index
    %c0_31 = arith.constant 0 : index
    %c0_32 = arith.constant 0 : index
    %c0_33 = arith.constant 0 : index
    %79 = vector.load %arg8[%c0_30, %c0_31, %c0_32, %c0_33] : memref<1x1x16x16xf32, #tpu.memory_space<vmem>>, vector<1x1x8x8xf32>
    %80 = vector.shape_cast %79 : vector<1x1x8x8xf32> to vector<8x8xf32>
    %c0_34 = arith.constant 0 : index
    %c0_35 = arith.constant 0 : index
    %c0_36 = arith.constant 0 : index
    %c0_37 = arith.constant 0 : index
    %81 = vector.load %arg9[%c0_34, %c0_35, %c0_36, %c0_37] : memref<1x1x16x16xf32, #tpu.memory_space<vmem>>, vector<1x1x8x8xf32>
    %82 = vector.shape_cast %81 : vector<1x1x8x8xf32> to vector<8x8xf32>
    %83 = arith.mulf %80, %74 : vector<8x8xf32>
    %84 = arith.mulf %82, %78 : vector<8x8xf32>
    %85 = arith.subf %83, %84 : vector<8x8xf32>
    %86 = arith.mulf %80, %78 : vector<8x8xf32>
    %87 = arith.mulf %82, %74 : vector<8x8xf32>
    %88 = arith.addf %86, %87 : vector<8x8xf32>
    %89 = vector.extract_strided_slice %5 {offsets = [0, 0], sizes = [8, 8], strides = [1, 1]} : vector<16x16xf32> to vector<8x8xf32>
    %90 = arith.subf %89, %85 : vector<8x8xf32>
    %91 = vector.broadcast %3 : f32 to vector<8x8xf32>
    %92 = arith.mulf %90, %91 : vector<8x8xf32>
    %c0_38 = arith.constant 0 : index
    %c0_39 = arith.constant 0 : index
    %c0_40 = arith.constant 0 : index
    %c0_41 = arith.constant 0 : index
    %93 = vector.load %arg12[%c0_38, %c0_39, %c0_40, %c0_41] : memref<1x1x16x16xf32, #tpu.memory_space<vmem>>, vector<1x1x8x8xf32>
    %94 = vector.shape_cast %93 : vector<1x1x8x8xf32> to vector<8x8xf32>
    %95 = vector.shape_cast %92 : vector<8x8xf32> to vector<1x1x8x8xf32>
    tpu.vector_store %arg12[%c0_38, %c0_39, %c0_40, %c0_41], %95 {strides = array<i32>} : memref<1x1x16x16xf32, #tpu.memory_space<vmem>>, vector<1x1x8x8xf32>,
    %96 = vector.extract_strided_slice %7 {offsets = [0, 0], sizes = [8, 8], strides = [1, 1]} : vector<16x16xf32> to vector<8x8xf32>
    %97 = arith.subf %96, %88 : vector<8x8xf32>
    %98 = vector.broadcast %3 : f32 to vector<8x8xf32>
    %99 = arith.mulf %97, %98 : vector<8x8xf32>
    %c0_42 = arith.constant 0 : index
    %c0_43 = arith.constant 0 : index
    %c0_44 = arith.constant 0 : index
    %c0_45 = arith.constant 0 : index
    %100 = vector.load %arg13[%c0_42, %c0_43, %c0_44, %c0_45] : memref<1x1x16x16xf32, #tpu.memory_space<vmem>>, vector<1x1x8x8xf32>
    %101 = vector.shape_cast %100 : vector<1x1x8x8xf32> to vector<8x8xf32>
    %102 = vector.shape_cast %99 : vector<8x8xf32> to vector<1x1x8x8xf32>
    tpu.vector_store %arg13[%c0_42, %c0_43, %c0_44, %c0_45], %102 {strides = array<i32>} : memref<1x1x16x16xf32, #tpu.memory_space<vmem>>, vector<1x1x8x8xf32>,
    %c0_46 = arith.constant 0 : index
    %c0_47 = arith.constant 0 : index
    %c0_48 = arith.constant 0 : index
    %c8 = arith.constant 8 : index
    %103 = vector.load %arg8[%c0_46, %c0_47, %c0_48, %c8] : memref<1x1x16x16xf32, #tpu.memory_space<vmem>>, vector<1x1x8x8xf32>
    %104 = vector.shape_cast %103 : vector<1x1x8x8xf32> to vector<8x8xf32>
    %c0_49 = arith.constant 0 : index
    %c0_50 = arith.constant 0 : index
    %c0_51 = arith.constant 0 : index
    %c8_52 = arith.constant 8 : index
    %105 = vector.load %arg9[%c0_49, %c0_50, %c0_51, %c8_52] : memref<1x1x16x16xf32, #tpu.memory_space<vmem>>, vector<1x1x8x8xf32>
    %106 = vector.shape_cast %105 : vector<1x1x8x8xf32> to vector<8x8xf32>
    %107 = arith.mulf %104, %74 : vector<8x8xf32>
    %108 = arith.mulf %106, %78 : vector<8x8xf32>
    %109 = arith.subf %107, %108 : vector<8x8xf32>
    %110 = arith.mulf %104, %78 : vector<8x8xf32>
    %111 = arith.mulf %106, %74 : vector<8x8xf32>
    %112 = arith.addf %110, %111 : vector<8x8xf32>
    %113 = vector.extract_strided_slice %5 {offsets = [0, 8], sizes = [8, 8], strides = [1, 1]} : vector<16x16xf32> to vector<8x8xf32>
    %114 = arith.subf %113, %109 : vector<8x8xf32>
    %115 = vector.broadcast %3 : f32 to vector<8x8xf32>
    %116 = arith.mulf %114, %115 : vector<8x8xf32>
    %c0_53 = arith.constant 0 : index
    %c0_54 = arith.constant 0 : index
    %c0_55 = arith.constant 0 : index
    %c8_56 = arith.constant 8 : index
    %117 = vector.load %arg12[%c0_53, %c0_54, %c0_55, %c8_56] : memref<1x1x16x16xf32, #tpu.memory_space<vmem>>, vector<1x1x8x8xf32>
    %118 = vector.shape_cast %117 : vector<1x1x8x8xf32> to vector<8x8xf32>
    %119 = vector.shape_cast %116 : vector<8x8xf32> to vector<1x1x8x8xf32>
    tpu.vector_store %arg12[%c0_53, %c0_54, %c0_55, %c8_56], %119 {strides = array<i32>} : memref<1x1x16x16xf32, #tpu.memory_space<vmem>>, vector<1x1x8x8xf32>,
    %120 = vector.extract_strided_slice %7 {offsets = [0, 8], sizes = [8, 8], strides = [1, 1]} : vector<16x16xf32> to vector<8x8xf32>
    %121 = arith.subf %120, %112 : vector<8x8xf32>
    %122 = vector.broadcast %3 : f32 to vector<8x8xf32>
    %123 = arith.mulf %121, %122 : vector<8x8xf32>
    %c0_57 = arith.constant 0 : index
    %c0_58 = arith.constant 0 : index
    %c0_59 = arith.constant 0 : index
    %c8_60 = arith.constant 8 : index
    %124 = vector.load %arg13[%c0_57, %c0_58, %c0_59, %c8_60] : memref<1x1x16x16xf32, #tpu.memory_space<vmem>>, vector<1x1x8x8xf32>
    %125 = vector.shape_cast %124 : vector<1x1x8x8xf32> to vector<8x8xf32>
    %126 = vector.shape_cast %123 : vector<8x8xf32> to vector<1x1x8x8xf32>
    tpu.vector_store %arg13[%c0_57, %c0_58, %c0_59, %c8_60], %126 {strides = array<i32>} : memref<1x1x16x16xf32, #tpu.memory_space<vmem>>, vector<1x1x8x8xf32>,
    %c0_61 = arith.constant 0 : index
    %c0_62 = arith.constant 0 : index
    %c8_63 = arith.constant 8 : index
    %c0_64 = arith.constant 0 : index
    %127 = vector.load %arg8[%c0_61, %c0_62, %c8_63, %c0_64] : memref<1x1x16x16xf32, #tpu.memory_space<vmem>>, vector<1x1x8x8xf32>
    %128 = vector.shape_cast %127 : vector<1x1x8x8xf32> to vector<8x8xf32>
    %c0_65 = arith.constant 0 : index
    %c0_66 = arith.constant 0 : index
    %c8_67 = arith.constant 8 : index
    %c0_68 = arith.constant 0 : index
    %129 = vector.load %arg9[%c0_65, %c0_66, %c8_67, %c0_68] : memref<1x1x16x16xf32, #tpu.memory_space<vmem>>, vector<1x1x8x8xf32>
    %130 = vector.shape_cast %129 : vector<1x1x8x8xf32> to vector<8x8xf32>
    %131 = arith.mulf %128, %74 : vector<8x8xf32>
    %132 = arith.mulf %130, %78 : vector<8x8xf32>
    %133 = arith.subf %131, %132 : vector<8x8xf32>
    %134 = arith.mulf %128, %78 : vector<8x8xf32>
    %135 = arith.mulf %130, %74 : vector<8x8xf32>
    %136 = arith.addf %134, %135 : vector<8x8xf32>
    %137 = vector.extract_strided_slice %5 {offsets = [8, 0], sizes = [8, 8], strides = [1, 1]} : vector<16x16xf32> to vector<8x8xf32>
    %138 = arith.subf %137, %133 : vector<8x8xf32>
    %139 = vector.broadcast %3 : f32 to vector<8x8xf32>
    %140 = arith.mulf %138, %139 : vector<8x8xf32>
    %c0_69 = arith.constant 0 : index
    %c0_70 = arith.constant 0 : index
    %c8_71 = arith.constant 8 : index
    %c0_72 = arith.constant 0 : index
    %141 = vector.load %arg12[%c0_69, %c0_70, %c8_71, %c0_72] : memref<1x1x16x16xf32, #tpu.memory_space<vmem>>, vector<1x1x8x8xf32>
    %142 = vector.shape_cast %141 : vector<1x1x8x8xf32> to vector<8x8xf32>
    %143 = vector.shape_cast %140 : vector<8x8xf32> to vector<1x1x8x8xf32>
    tpu.vector_store %arg12[%c0_69, %c0_70, %c8_71, %c0_72], %143 {strides = array<i32>} : memref<1x1x16x16xf32, #tpu.memory_space<vmem>>, vector<1x1x8x8xf32>,
    %144 = vector.extract_strided_slice %7 {offsets = [8, 0], sizes = [8, 8], strides = [1, 1]} : vector<16x16xf32> to vector<8x8xf32>
    %145 = arith.subf %144, %136 : vector<8x8xf32>
    %146 = vector.broadcast %3 : f32 to vector<8x8xf32>
    %147 = arith.mulf %145, %146 : vector<8x8xf32>
    %c0_73 = arith.constant 0 : index
    %c0_74 = arith.constant 0 : index
    %c8_75 = arith.constant 8 : index
    %c0_76 = arith.constant 0 : index
    %148 = vector.load %arg13[%c0_73, %c0_74, %c8_75, %c0_76] : memref<1x1x16x16xf32, #tpu.memory_space<vmem>>, vector<1x1x8x8xf32>
    %149 = vector.shape_cast %148 : vector<1x1x8x8xf32> to vector<8x8xf32>
    %150 = vector.shape_cast %147 : vector<8x8xf32> to vector<1x1x8x8xf32>
    tpu.vector_store %arg13[%c0_73, %c0_74, %c8_75, %c0_76], %150 {strides = array<i32>} : memref<1x1x16x16xf32, #tpu.memory_space<vmem>>, vector<1x1x8x8xf32>,
    %c0_77 = arith.constant 0 : index
    %c0_78 = arith.constant 0 : index
    %c8_79 = arith.constant 8 : index
    %c8_80 = arith.constant 8 : index
    %151 = vector.load %arg8[%c0_77, %c0_78, %c8_79, %c8_80] : memref<1x1x16x16xf32, #tpu.memory_space<vmem>>, vector<1x1x8x8xf32>
    %152 = vector.shape_cast %151 : vector<1x1x8x8xf32> to vector<8x8xf32>
    %c0_81 = arith.constant 0 : index
    %c0_82 = arith.constant 0 : index
    %c8_83 = arith.constant 8 : index
    %c8_84 = arith.constant 8 : index
    %153 = vector.load %arg9[%c0_81, %c0_82, %c8_83, %c8_84] : memref<1x1x16x16xf32, #tpu.memory_space<vmem>>, vector<1x1x8x8xf32>
    %154 = vector.shape_cast %153 : vector<1x1x8x8xf32> to vector<8x8xf32>
    %155 = arith.mulf %152, %74 : vector<8x8xf32>
    %156 = arith.mulf %154, %78 : vector<8x8xf32>
    %157 = arith.subf %155, %156 : vector<8x8xf32>
    %158 = arith.mulf %152, %78 : vector<8x8xf32>
    %159 = arith.mulf %154, %74 : vector<8x8xf32>
    %160 = arith.addf %158, %159 : vector<8x8xf32>
    %161 = vector.extract_strided_slice %5 {offsets = [8, 8], sizes = [8, 8], strides = [1, 1]} : vector<16x16xf32> to vector<8x8xf32>
    %162 = arith.subf %161, %157 : vector<8x8xf32>
    %163 = vector.broadcast %3 : f32 to vector<8x8xf32>
    %164 = arith.mulf %162, %163 : vector<8x8xf32>
    %c0_85 = arith.constant 0 : index
    %c0_86 = arith.constant 0 : index
    %c8_87 = arith.constant 8 : index
    %c8_88 = arith.constant 8 : index
    %165 = vector.load %arg12[%c0_85, %c0_86, %c8_87, %c8_88] : memref<1x1x16x16xf32, #tpu.memory_space<vmem>>, vector<1x1x8x8xf32>
    %166 = vector.shape_cast %165 : vector<1x1x8x8xf32> to vector<8x8xf32>
    %167 = vector.shape_cast %164 : vector<8x8xf32> to vector<1x1x8x8xf32>
    tpu.vector_store %arg12[%c0_85, %c0_86, %c8_87, %c8_88], %167 {strides = array<i32>} : memref<1x1x16x16xf32, #tpu.memory_space<vmem>>, vector<1x1x8x8xf32>,
    %168 = vector.extract_strided_slice %7 {offsets = [8, 8], sizes = [8, 8], strides = [1, 1]} : vector<16x16xf32> to vector<8x8xf32>
    %169 = arith.subf %168, %160 : vector<8x8xf32>
    %170 = vector.broadcast %3 : f32 to vector<8x8xf32>
    %171 = arith.mulf %169, %170 : vector<8x8xf32>
    %c0_89 = arith.constant 0 : index
    %c0_90 = arith.constant 0 : index
    %c8_91 = arith.constant 8 : index
    %c8_92 = arith.constant 8 : index
    %172 = vector.load %arg13[%c0_89, %c0_90, %c8_91, %c8_92] : memref<1x1x16x16xf32, #tpu.memory_space<vmem>>, vector<1x1x8x8xf32>
    %173 = vector.shape_cast %172 : vector<1x1x8x8xf32> to vector<8x8xf32>
    %174 = vector.shape_cast %171 : vector<8x8xf32> to vector<1x1x8x8xf32>
    tpu.vector_store %arg13[%c0_89, %c0_90, %c8_91, %c8_92], %174 {strides = array<i32>} : memref<1x1x16x16xf32, #tpu.memory_space<vmem>>, vector<1x1x8x8xf32>,
    return
  }
  func.func @transform_0(%arg0: i32, %arg1: i32, %arg2: memref<2xf32, #tpu.memory_space<smem>>, %arg3: memref<2xf32, #tpu.memory_space<smem>>) -> (i32, i32, i32, i32) {
    %c0_i32 = arith.constant 0 : i32
    %c0_i32_0 = arith.constant 0 : i32
    %c0_i32_1 = arith.constant 0 : i32
    return %arg0, %arg1, %c0_i32, %c0_i32_0 : i32, i32, i32, i32
  }
  func.func @transform_1(%arg0: i32, %arg1: i32, %arg2: memref<2xf32, #tpu.memory_space<smem>>, %arg3: memref<2xf32, #tpu.memory_space<smem>>) -> (i32, i32, i32, i32) {
    %c0_i32 = arith.constant 0 : i32
    %c0_i32_0 = arith.constant 0 : i32
    %c0_i32_1 = arith.constant 0 : i32
    return %arg0, %arg1, %c0_i32, %c0_i32_0 : i32, i32, i32, i32
  }
  func.func @transform_2(%arg0: i32, %arg1: i32, %arg2: memref<2xf32, #tpu.memory_space<smem>>, %arg3: memref<2xf32, #tpu.memory_space<smem>>) -> (i32, i32, i32, i32) {
    %c0_i32 = arith.constant 0 : i32
    %c0_i32_0 = arith.constant 0 : i32
    %c0_i32_1 = arith.constant 0 : i32
    %c0_i32_2 = arith.constant 0 : i32
    %c0_i32_3 = arith.constant 0 : i32
    return %c0_i32, %c0_i32_0, %c0_i32_1, %c0_i32_2 : i32, i32, i32, i32
  }
  func.func @transform_3(%arg0: i32, %arg1: i32, %arg2: memref<2xf32, #tpu.memory_space<smem>>, %arg3: memref<2xf32, #tpu.memory_space<smem>>) -> (i32, i32, i32, i32) {
    %c0_i32 = arith.constant 0 : i32
    %c0_i32_0 = arith.constant 0 : i32
    %c0_i32_1 = arith.constant 0 : i32
    %c0_i32_2 = arith.constant 0 : i32
    %c0_i32_3 = arith.constant 0 : i32
    return %c0_i32, %c0_i32_0, %c0_i32_1, %c0_i32_2 : i32, i32, i32, i32
  }
  func.func @transform_4(%arg0: i32, %arg1: i32, %arg2: memref<2xf32, #tpu.memory_space<smem>>, %arg3: memref<2xf32, #tpu.memory_space<smem>>) -> (i32, i32, i32, i32) {
    %c0_i32 = arith.constant 0 : i32
    %c0_i32_0 = arith.constant 0 : i32
    %c0_i32_1 = arith.constant 0 : i32
    %c0_i32_2 = arith.constant 0 : i32
    %c0_i32_3 = arith.constant 0 : i32
    return %c0_i32, %c0_i32_0, %c0_i32_1, %c0_i32_2 : i32, i32, i32, i32
  }
  func.func @transform_5(%arg0: i32, %arg1: i32, %arg2: memref<2xf32, #tpu.memory_space<smem>>, %arg3: memref<2xf32, #tpu.memory_space<smem>>) -> (i32, i32, i32, i32) {
    %c0_i32 = arith.constant 0 : i32
    %c0_i32_0 = arith.constant 0 : i32
    %c0_i32_1 = arith.constant 0 : i32
    %c0_i32_2 = arith.constant 0 : i32
    %c0_i32_3 = arith.constant 0 : i32
    return %c0_i32, %c0_i32_0, %c0_i32_1, %c0_i32_2 : i32, i32, i32, i32
  }
  func.func @transform_6(%arg0: i32, %arg1: i32, %arg2: memref<2xf32, #tpu.memory_space<smem>>, %arg3: memref<2xf32, #tpu.memory_space<smem>>) -> (i32, i32, i32, i32) {
    %c0_i32 = arith.constant 0 : i32
    %c0_i32_0 = arith.constant 0 : i32
    %c0_i32_1 = arith.constant 0 : i32
    %c0_i32_2 = arith.constant 0 : i32
    %c0_i32_3 = arith.constant 0 : i32
    return %c0_i32, %c0_i32_0, %c0_i32_1, %c0_i32_2 : i32, i32, i32, i32
  }
  func.func @transform_7(%arg0: i32, %arg1: i32, %arg2: memref<2xf32, #tpu.memory_space<smem>>, %arg3: memref<2xf32, #tpu.memory_space<smem>>) -> (i32, i32, i32, i32) {
    %c0_i32 = arith.constant 0 : i32
    %c0_i32_0 = arith.constant 0 : i32
    %c0_i32_1 = arith.constant 0 : i32
    %c0_i32_2 = arith.constant 0 : i32
    %c0_i32_3 = arith.constant 0 : i32
    return %c0_i32, %c0_i32_0, %c0_i32_1, %c0_i32_2 : i32, i32, i32, i32
  }
  func.func @transform_8(%arg0: i32, %arg1: i32, %arg2: memref<2xf32, #tpu.memory_space<smem>>, %arg3: memref<2xf32, #tpu.memory_space<smem>>) -> (i32, i32, i32, i32) {
    %c0_i32 = arith.constant 0 : i32
    %c0_i32_0 = arith.constant 0 : i32
    %c0_i32_1 = arith.constant 0 : i32
    return %arg0, %arg1, %c0_i32, %c0_i32_0 : i32, i32, i32, i32
  }
  func.func @transform_9(%arg0: i32, %arg1: i32, %arg2: memref<2xf32, #tpu.memory_space<smem>>, %arg3: memref<2xf32, #tpu.memory_space<smem>>) -> (i32, i32, i32, i32) {
    %c0_i32 = arith.constant 0 : i32
    %c0_i32_0 = arith.constant 0 : i32
    %c0_i32_1 = arith.constant 0 : i32
    return %arg0, %arg1, %c0_i32, %c0_i32_0 : i32, i32, i32, i32
  }
}

</mosaic_0001>

<llo_original>
// kernel: datanet_forward.1
$region0: #{datanet_forward.1}
  #allocation0 [shape = 'u32[]', space=smem, size = 0x4, offset = 0x4, fixed_abs, tag = 'smem constant byte address 0x4 - core index']
  #allocation1 [shape = 'u32[144,128]{1,0:T(1,128)}', space=vmem, size = 0x12000, scoped, tag = 'internal scratch']
  #allocation2 [shape = 's32[1]{0}', space=sflag, size = 0x4, scoped, tag = 'scoped memory for datanet_forward.1']
  #allocation3 [shape = 'u8[512]{0}', space=smem, size = 0x200, scoped, tag = 'prefetched SMEM operand 0']
  #allocation4 [shape = 'u8[512]{0}', space=smem, size = 0x200, scoped, tag = 'prefetched SMEM operand 1']
  %s0 = inlined_call_operand.vmem [shape: f32[2], index: 0, kind: input, shape index: {}]
  %s1 = inlined_call_operand.vmem [shape: f32[2], index: 1, kind: input, shape index: {}]
  %s2 = inlined_call_operand.vmem [shape: f32[2,3,16,16], index: 2, kind: input, shape index: {}]
  %s3 = inlined_call_operand.vmem [shape: f32[2,3,16,16], index: 3, kind: input, shape index: {}]
  %s4 = inlined_call_operand.vmem [shape: f32[1,1,16,16], index: 4, kind: input, shape index: {}]
  %s5 = inlined_call_operand.vmem [shape: f32[1,1,16,16], index: 5, kind: input, shape index: {}]
  %s6 = inlined_call_operand.vmem [shape: f32[1,1,16,16], index: 6, kind: input, shape index: {}]
  %s7 = inlined_call_operand.vmem [shape: f32[1,1,16,16], index: 7, kind: input, shape index: {}]
  %s8 = inlined_call_operand.vmem [shape: f32[1,1,16,16], index: 8, kind: input, shape index: {}]
  %s9 = inlined_call_operand.vmem [shape: f32[1,1,16,16], index: 9, kind: input, shape index: {}]
  %s10 = inlined_call_operand.vmem [shape: f32[2,3,16,16], index: 10, kind: output, shape index: {0}]
  %s11 = inlined_call_operand.vmem [shape: f32[2,3,16,16], index: 11, kind: output, shape index: {1}]
  %12 = xla_tuple %s10, %s11
  %s13 = sld [smem:[#allocation0]]
  $region73: #{datanet_forward.1} parent=0
    _
  %s15 = ssub.s32 1, %s13
  %s16 = scalar_select 0, %s15, %s13
  %s17 = sshll.u32 %s0, 4
  %s18 = int_to_ptr.vmem [resolvable:$true] %s17
  %20 = dma.vmem_to_smem %s18, 16, [#allocation3], [#allocation2]
  %s21 = sshll.u32 %s1, 4
  %s22 = int_to_ptr.vmem [resolvable:$true] %s21
  %24 = dma.vmem_to_smem %s22, 16, [#allocation4], [#allocation2]
  %25 = dma.done [#allocation2], 32
  %26 = sfence
  loop: start=0, step=1, limit=8
  $region2: #{datanet_forward.1} parent=0 // loop_pre_header
    _
  $region3: #{datanet_forward.1} parent=0 // loop_header
    %s28 = sphi 0, %s32
    %p29 = scmp.ge.s32.totalorder %s28, 8
    %s35 = sphi 0, %s47
    %s36 = sphi 0, %s43
    %s37 = sphi 0, %s35
    %s38 = sphi 0, %s36
    %s39 = sphi 0, %s37
    %s40 = sphi 0, %s38
    %s52 = sphi 0, %s54
    %s55 = sphi 0, %s52
    %s56 = sphi 0, %s55
    %s72 = sphi 0, %s56
    %s80 = sphi 0, %s82
    %s83 = sphi 0, %s80
    %s84 = sphi 0, %s83
    %s100 = sphi 0, %s84
    %s104 = sphi 0, %s104
    %s106 = sphi 0, %s104
    %s107 = sphi 0, %s106
    %s121 = sphi 0, %s107
    %s125 = sphi 0, %s125
    %s127 = sphi 0, %s125
    %s128 = sphi 0, %s127
    %s142 = sphi 0, %s128
    %s146 = sphi 0, %s146
    %s148 = sphi 0, %s146
    %s149 = sphi 0, %s148
    %s163 = sphi 0, %s149
    %s167 = sphi 0, %s167
    %s169 = sphi 0, %s167
    %s170 = sphi 0, %s169
    %s184 = sphi 0, %s170
    %s188 = sphi 0, %s188
    %s190 = sphi 0, %s188
    %s191 = sphi 0, %s190
    %s205 = sphi 0, %s191
    %s209 = sphi 0, %s209
    %s211 = sphi 0, %s209
    %s212 = sphi 0, %s211
    %s226 = sphi 0, %s212
    %s234 = sphi 0, %s236
    %s237 = sphi 0, %s234
    %s238 = sphi 0, %s237
    %s254 = sphi 0, %s238
    %s262 = sphi 0, %s264
    %s265 = sphi 0, %s262
    %s266 = sphi 0, %s265
    %s282 = sphi 0, %s266
  $region4: #{datanet_forward.1} parent=0 // loop_header_branch
    %31 = sbr.rel (%p29) target = $region8
  $region5: #{datanet_forward.1} parent=0 // loop_body
    %s33 = ssub.s32 %s28, 1
    %s34 = ssub.s32 %s28, 2
    %s41 = sadd.s32 1, %s36
    %p42 = scmp.ge.s32.totalorder %s41, 3
    %s43 = scalar_select %p42, 0, %s41
    %s44 = sadd.s32 1, %s35
    %s45 = scalar_select %p42, %s44, %s35
    %p46 = scmp.ge.s32.totalorder %s45, 2
    %s47 = scalar_select %p46, 0, %s45
    %s48 = ssub.s32 %s35, %s47
    %s49 = ssub.s32 %s36, %s43
    %s50 = sor.u32 %s48, %s49
    %p51 = scmp.eq.s32.totalorder %s50, 0
    %s53 = sadd.s32 %s52, 1
    %s54 = scalar_select %p51, %s52, %s53
    %p57 = pneg %p51
    %p58 = scmp.eq.s32.totalorder %s28, 5
    %p59 = por %p57, %p58
    %p60 = scmp.ne.s32.totalorder %s52, %s55
    %p61 = scmp.eq.s32.totalorder %s28, 0
    %p62 = por %p60, %p61
    %p63 = scmp.ne.s32.totalorder %s52, %s55
    %p64 = scmp.eq.s32.totalorder %s33, 5
    %p65 = por %p63, %p64
    %p66 = scmp.ne.s32.totalorder %s55, %s56
    %p67 = scmp.eq.s32.totalorder %s33, 0
    %p68 = por %p66, %p67
    %p69 = scmp.ne.s32.totalorder %s55, %s56
    %p70 = scmp.eq.s32.totalorder %s34, 5
    %p71 = por %p69, %p70
    %p73 = scmp.ne.s32.totalorder %s56, %s72
    %p74 = scmp.eq.s32.totalorder %s34, 0
    %p75 = por %p73, %p74
    %s76 = ssub.s32 %s35, %s47
    %s77 = ssub.s32 %s36, %s43
    %s78 = sor.u32 %s76, %s77
    %p79 = scmp.eq.s32.totalorder %s78, 0
    %s81 = sadd.s32 %s80, 1
    %s82 = scalar_select %p79, %s80, %s81
    %p85 = pneg %p79
    %p86 = scmp.eq.s32.totalorder %s28, 5
    %p87 = por %p85, %p86
    %p88 = scmp.ne.s32.totalorder %s80, %s83
    %p89 = scmp.eq.s32.totalorder %s28, 0
    %p90 = por %p88, %p89
    %p91 = scmp.ne.s32.totalorder %s80, %s83
    %p92 = scmp.eq.s32.totalorder %s33, 5
    %p93 = por %p91, %p92
    %p94 = scmp.ne.s32.totalorder %s83, %s84
    %p95 = scmp.eq.s32.totalorder %s33, 0
    %p96 = por %p94, %p95
    %p97 = scmp.ne.s32.totalorder %s83, %s84
    %p98 = scmp.eq.s32.totalorder %s34, 5
    %p99 = por %p97, %p98
    %p101 = scmp.ne.s32.totalorder %s84, %s100
    %p102 = scmp.eq.s32.totalorder %s34, 0
    %p103 = por %p101, %p102
    %s105 = sadd.s32 %s104, 1
    %p108 = scmp.eq.s32.totalorder %s28, 5
    %p109 = scmp.ne.s32.totalorder %s104, %s106
    %p110 = scmp.eq.s32.totalorder %s28, 0
    %p111 = por %p109, %p110
    %p112 = scmp.ne.s32.totalorder %s104, %s106
    %p113 = scmp.eq.s32.totalorder %s33, 5
    %p114 = por %p112, %p113
    %p115 = scmp.ne.s32.totalorder %s106, %s107
    %p116 = scmp.eq.s32.totalorder %s33, 0
    %p117 = por %p115, %p116
    %p118 = scmp.ne.s32.totalorder %s106, %s107
    %p119 = scmp.eq.s32.totalorder %s34, 5
    %p120 = por %p118, %p119
    %p122 = scmp.ne.s32.totalorder %s107, %s121
    %p123 = scmp.eq.s32.totalorder %s34, 0
    %p124 = por %p122, %p123
    %s126 = sadd.s32 %s125, 1
    %p129 = scmp.eq.s32.totalorder %s28, 5
    %p130 = scmp.ne.s32.totalorder %s125, %s127
    %p131 = scmp.eq.s32.totalorder %s28, 0
    %p132 = por %p130, %p131
    %p133 = scmp.ne.s32.totalorder %s125, %s127
    %p134 = scmp.eq.s32.totalorder %s33, 5
    %p135 = por %p133, %p134
    %p136 = scmp.ne.s32.totalorder %s127, %s128
    %p137 = scmp.eq.s32.totalorder %s33, 0
    %p138 = por %p136, %p137
    %p139 = scmp.ne.s32.totalorder %s127, %s128
    %p140 = scmp.eq.s32.totalorder %s34, 5
    %p141 = por %p139, %p140
    %p143 = scmp.ne.s32.totalorder %s128, %s142
    %p144 = scmp.eq.s32.totalorder %s34, 0
    %p145 = por %p143, %p144
    %s147 = sadd.s32 %s146, 1
    %p150 = scmp.eq.s32.totalorder %s28, 5
    %p151 = scmp.ne.s32.totalorder %s146, %s148
    %p152 = scmp.eq.s32.totalorder %s28, 0
    %p153 = por %p151, %p152
    %p154 = scmp.ne.s32.totalorder %s146, %s148
    %p155 = scmp.eq.s32.totalorder %s33, 5
    %p156 = por %p154, %p155
    %p157 = scmp.ne.s32.totalorder %s148, %s149
    %p158 = scmp.eq.s32.totalorder %s33, 0
    %p159 = por %p157, %p158
    %p160 = scmp.ne.s32.totalorder %s148, %s149
    %p161 = scmp.eq.s32.totalorder %s34, 5
    %p162 = por %p160, %p161
    %p164 = scmp.ne.s32.totalorder %s149, %s163
    %p165 = scmp.eq.s32.totalorder %s34, 0
    %p166 = por %p164, %p165
    %s168 = sadd.s32 %s167, 1
    %p171 = scmp.eq.s32.totalorder %s28, 5
    %p172 = scmp.ne.s32.totalorder %s167, %s169
    %p173 = scmp.eq.s32.totalorder %s28, 0
    %p174 = por %p172, %p173
    %p175 = scmp.ne.s32.totalorder %s167, %s169
    %p176 = scmp.eq.s32.totalorder %s33, 5
    %p177 = por %p175, %p176
    %p178 = scmp.ne.s32.totalorder %s169, %s170
    %p179 = scmp.eq.s32.totalorder %s33, 0
    %p180 = por %p178, %p179
    %p181 = scmp.ne.s32.totalorder %s169, %s170
    %p182 = scmp.eq.s32.totalorder %s34, 5
    %p183 = por %p181, %p182
    %p185 = scmp.ne.s32.totalorder %s170, %s184
    %p186 = scmp.eq.s32.totalorder %s34, 0
    %p187 = por %p185, %p186
    %s189 = sadd.s32 %s188, 1
    %p192 = scmp.eq.s32.totalorder %s28, 5
    %p193 = scmp.ne.s32.totalorder %s188, %s190
    %p194 = scmp.eq.s32.totalorder %s28, 0
    %p195 = por %p193, %p194
    %p196 = scmp.ne.s32.totalorder %s188, %s190
    %p197 = scmp.eq.s32.totalorder %s33, 5
    %p198 = por %p196, %p197
    %p199 = scmp.ne.s32.totalorder %s190, %s191
    %p200 = scmp.eq.s32.totalorder %s33, 0
    %p201 = por %p199, %p200
    %p202 = scmp.ne.s32.totalorder %s190, %s191
    %p203 = scmp.eq.s32.totalorder %s34, 5
    %p204 = por %p202, %p203
    %p206 = scmp.ne.s32.totalorder %s191, %s205
    %p207 = scmp.eq.s32.totalorder %s34, 0
    %p208 = por %p206, %p207
    %s210 = sadd.s32 %s209, 1
    %p213 = scmp.eq.s32.totalorder %s28, 5
    %p214 = scmp.ne.s32.totalorder %s209, %s211
    %p215 = scmp.eq.s32.totalorder %s28, 0
    %p216 = por %p214, %p215
    %p217 = scmp.ne.s32.totalorder %s209, %s211
    %p218 = scmp.eq.s32.totalorder %s33, 5
    %p219 = por %p217, %p218
    %p220 = scmp.ne.s32.totalorder %s211, %s212
    %p221 = scmp.eq.s32.totalorder %s33, 0
    %p222 = por %p220, %p221
    %p223 = scmp.ne.s32.totalorder %s211, %s212
    %p224 = scmp.eq.s32.totalorder %s34, 5
    %p225 = por %p223, %p224
    %p227 = scmp.ne.s32.totalorder %s212, %s226
    %p228 = scmp.eq.s32.totalorder %s34, 0
    %p229 = por %p227, %p228
    %s230 = ssub.s32 %s35, %s47
    %s231 = ssub.s32 %s36, %s43
    %s232 = sor.u32 %s230, %s231
    %p233 = scmp.eq.s32.totalorder %s232, 0
    %s235 = sadd.s32 %s234, 1
    %s236 = scalar_select %p233, %s234, %s235
    %p239 = pneg %p233
    %p240 = scmp.eq.s32.totalorder %s28, 5
    %p241 = por %p239, %p240
    %p242 = scmp.ne.s32.totalorder %s234, %s237
    %p243 = scmp.eq.s32.totalorder %s28, 0
    %p244 = por %p242, %p243
    %p245 = scmp.ne.s32.totalorder %s234, %s237
    %p246 = scmp.eq.s32.totalorder %s33, 5
    %p247 = por %p245, %p246
    %p248 = scmp.ne.s32.totalorder %s237, %s238
    %p249 = scmp.eq.s32.totalorder %s33, 0
    %p250 = por %p248, %p249
    %p251 = scmp.ne.s32.totalorder %s237, %s238
    %p252 = scmp.eq.s32.totalorder %s34, 5
    %p253 = por %p251, %p252
    %p255 = scmp.ne.s32.totalorder %s238, %s254
    %p256 = scmp.eq.s32.totalorder %s34, 0
    %p257 = por %p255, %p256
    %s258 = ssub.s32 %s35, %s47
    %s259 = ssub.s32 %s36, %s43
    %s260 = sor.u32 %s258, %s259
    %p261 = scmp.eq.s32.totalorder %s260, 0
    %s263 = sadd.s32 %s262, 1
    %s264 = scalar_select %p261, %s262, %s263
    %p267 = pneg %p261
    %p268 = scmp.eq.s32.totalorder %s28, 5
    %p269 = por %p267, %p268
    %p270 = scmp.ne.s32.totalorder %s262, %s265
    %p271 = scmp.eq.s32.totalorder %s28, 0
    %p272 = por %p270, %p271
    %p273 = scmp.ne.s32.totalorder %s262, %s265
    %p274 = scmp.eq.s32.totalorder %s33, 5
    %p275 = por %p273, %p274
    %p276 = scmp.ne.s32.totalorder %s265, %s266
    %p277 = scmp.eq.s32.totalorder %s33, 0
    %p278 = por %p276, %p277
    %p279 = scmp.ne.s32.totalorder %s265, %s266
    %p280 = scmp.eq.s32.totalorder %s34, 5
    %p281 = por %p279, %p280
    %p283 = scmp.ne.s32.totalorder %s266, %s282
    %p284 = scmp.eq.s32.totalorder %s34, 0
    %p285 = por %p283, %p284
    %p286 = scmp.le.s32.totalorder 1, %s28
    %p287 = scmp.lt.s32.totalorder %s28, 7
    %p288 = pnand %p286, %p287
    %p289 = pneg %p288
    // Predicated region
    $region9: #{datanet_forward.1} parent=5 // pred_check
      _
    $region10: #{datanet_forward.1} parent=5 // pred_check_branch
      %291 = sbr.rel (%p288) target = $region12
    $region11: #{datanet_forward.1} parent=5 // pred_region
      %s292 = ssub.s32 %s28, 1
      // Predicated region
      $region13: #{datanet_forward.1} parent=11 // pred_check
        %p293 = pneg %p117
      $region14: #{datanet_forward.1} parent=11 // pred_check_branch
        %295 = sbr.rel (%p293) target = $region16
      $region15: #{datanet_forward.1} parent=11 // pred_region
        _
      $region16: #{datanet_forward.1} parent=11 // pred_fallthru
        _
      // Predicated region
      $region17: #{datanet_forward.1} parent=11 // pred_check
        %p296 = pneg %p138
      $region18: #{datanet_forward.1} parent=11 // pred_check_branch
        %298 = sbr.rel (%p296) target = $region20
      $region19: #{datanet_forward.1} parent=11 // pred_region
        _
      $region20: #{datanet_forward.1} parent=11 // pred_fallthru
        _
      // Predicated region
      $region21: #{datanet_forward.1} parent=11 // pred_check
        %p299 = pneg %p159
      $region22: #{datanet_forward.1} parent=11 // pred_check_branch
        %301 = sbr.rel (%p299) target = $region24
      $region23: #{datanet_forward.1} parent=11 // pred_region
        _
      $region24: #{datanet_forward.1} parent=11 // pred_fallthru
        _
      // Predicated region
      $region25: #{datanet_forward.1} parent=11 // pred_check
        %p302 = pneg %p180
      $region26: #{datanet_forward.1} parent=11 // pred_check_branch
        %304 = sbr.rel (%p302) target = $region28
      $region27: #{datanet_forward.1} parent=11 // pred_region
        _
      $region28: #{datanet_forward.1} parent=11 // pred_fallthru
        _
      // Predicated region
      $region29: #{datanet_forward.1} parent=11 // pred_check
        %p305 = pneg %p201
      $region30: #{datanet_forward.1} parent=11 // pred_check_branch
        %307 = sbr.rel (%p305) target = $region32
      $region31: #{datanet_forward.1} parent=11 // pred_region
        _
      $region32: #{datanet_forward.1} parent=11 // pred_fallthru
        _
      // Predicated region
      $region33: #{datanet_forward.1} parent=11 // pred_check
        %p308 = pneg %p222
      $region34: #{datanet_forward.1} parent=11 // pred_check_branch
        %310 = sbr.rel (%p308) target = $region36
      $region35: #{datanet_forward.1} parent=11 // pred_region
        _
      $region36: #{datanet_forward.1} parent=11 // pred_fallthru
        _
    $region12: #{datanet_forward.1} parent=5 // pred_fallthru
      _
    %p311 = scmp.lt.s32.totalorder %s28, 6
    // Predicated region
    $region37: #{datanet_forward.1} parent=5 // pred_check
      %p312 = pneg %p311
    $region38: #{datanet_forward.1} parent=5 // pred_check_branch
      %314 = sbr.rel (%p312) target = $region40
    $region39: #{datanet_forward.1} parent=5 // pred_region
      // Predicated region
      $region41: #{datanet_forward.1} parent=39 // pred_check
        %p315 = pneg %p62
      $region42: #{datanet_forward.1} parent=39 // pred_check_branch
        %317 = sbr.rel (%p315) target = $region44
      $region43: #{datanet_forward.1} parent=39 // pred_region
        %p318 = scmp.lt.s32.totalorder %s35, 1
        %s319 = scalar_select %p318, %s35, 1
        %p320 = scmp.lt.s32.totalorder %s36, 2
        %s321 = scalar_select %p320, %s36, 2
        %s322 = smul.addr %s321, 2
        %s323 = smul.addr %s319, 6
        %s324 = sadd.s32 %s322, %s323
        %s325 = smul.addr %s324, 8
        %s326 = scalar_lea.vmem %s2, %s325
      $region44: #{datanet_forward.1} parent=39 // pred_fallthru
        _
      // Predicated region
      $region45: #{datanet_forward.1} parent=39 // pred_check
        %p327 = pneg %p90
      $region46: #{datanet_forward.1} parent=39 // pred_check_branch
        %329 = sbr.rel (%p327) target = $region48
      $region47: #{datanet_forward.1} parent=39 // pred_region
        %p330 = scmp.lt.s32.totalorder %s35, 1
        %s331 = scalar_select %p330, %s35, 1
        %p332 = scmp.lt.s32.totalorder %s36, 2
        %s333 = scalar_select %p332, %s36, 2
        %s334 = smul.addr %s333, 2
        %s335 = smul.addr %s331, 6
        %s336 = sadd.s32 %s334, %s335
        %s337 = smul.addr %s336, 8
        %s338 = scalar_lea.vmem %s3, %s337
      $region48: #{datanet_forward.1} parent=39 // pred_fallthru
        _
    $region40: #{datanet_forward.1} parent=5 // pred_fallthru
      _
    %p339 = scmp.le.s32.totalorder 1, %s28
    %p340 = scmp.lt.s32.totalorder %s28, 7
    %p341 = pnand %p339, %p340
    %p342 = pneg %p341
    // Predicated region
    $region49: #{datanet_forward.1} parent=5 // pred_check
      _
    $region50: #{datanet_forward.1} parent=5 // pred_check_branch
      %344 = sbr.rel (%p341) target = $region52
    $region51: #{datanet_forward.1} parent=5 // pred_region
      %s345 = ssub.s32 %s28, 1
      %p346 = scmp.lt.s32.totalorder %s37, 1
      %s347 = scalar_select %p346, %s37, 1
      %p348 = scmp.lt.s32.totalorder %s38, 2
      %s349 = scalar_select %p348, %s38, 2
      %s350 = smul.addr %s349, 2
      %s351 = smul.addr %s347, 6
      %s352 = sadd.s32 %s350, %s351
      %s353 = smul.addr %s352, 8
      %s354 = scalar_lea.vmem %s2, %s353
      %p355 = pneg %p68
      %p356 = pneg %p65
      %p357 = scmp.lt.s32.totalorder %s37, 1
      %s358 = scalar_select %p357, %s37, 1
      %p359 = scmp.lt.s32.totalorder %s38, 2
      %s360 = scalar_select %p359, %s38, 2
      %s361 = smul.addr %s360, 2
      %s362 = smul.addr %s358, 6
      %s363 = sadd.s32 %s361, %s362
      %s364 = smul.addr %s363, 8
      %s365 = scalar_lea.vmem %s3, %s364
      %p366 = pneg %p96
      %p367 = pneg %p93
      %p368 = pneg %p117
      %p369 = pneg %p114
      %p370 = pneg %p138
      %p371 = pneg %p135
      %p372 = pneg %p159
      %p373 = pneg %p156
      %p374 = pneg %p180
      %p375 = pneg %p177
      %p376 = pneg %p201
      %p377 = pneg %p198
      %p378 = pneg %p222
      %p379 = pneg %p219
      %p380 = pneg %p250
      %p381 = pneg %p247
      %p382 = scmp.lt.s32.totalorder %s37, 1
      %s383 = scalar_select %p382, %s37, 1
      %p384 = scmp.lt.s32.totalorder %s38, 2
      %s385 = scalar_select %p384, %s38, 2
      %s386 = smul.addr %s385, 2
      %s387 = smul.addr %s383, 6
      %s388 = sadd.s32 %s386, %s387
      %s389 = smul.addr %s388, 8
      %s390 = scalar_lea.vmem %s10, %s389
      %p391 = pneg %p278
      %p392 = pneg %p275
      %p393 = scmp.lt.s32.totalorder %s37, 1
      %s394 = scalar_select %p393, %s37, 1
      %p395 = scmp.lt.s32.totalorder %s38, 2
      %s396 = scalar_select %p395, %s38, 2
      %s397 = smul.addr %s396, 2
      %s398 = smul.addr %s394, 6
      %s399 = sadd.s32 %s397, %s398
      %s400 = smul.addr %s399, 8
      %s401 = scalar_lea.vmem %s11, %s400
      %p402 = scmp.lt.s32.totalorder %s37, 1
      %s403 = scalar_select %p402, %s37, 1
      %p404 = scmp.lt.s32.totalorder %s38, 2
      %s405 = scalar_select %p404, %s38, 2
      %s406 = smul.addr %s405, 2
      %s407 = smul.addr %s403, 6
      %s408 = sadd.s32 %s406, %s407
      %s409 = smul.addr %s408, 8
      %s410 = scalar_lea.vmem %s2, %s409
      %p411 = scmp.lt.s32.totalorder %s37, 1
      %s412 = scalar_select %p411, %s37, 1
      %p413 = scmp.lt.s32.totalorder %s38, 2
      %s414 = scalar_select %p413, %s38, 2
      %s415 = smul.addr %s414, 2
      %s416 = smul.addr %s412, 6
      %s417 = sadd.s32 %s415, %s416
      %s418 = smul.addr %s417, 8
      %s419 = scalar_lea.vmem %s3, %s418
      %p420 = scmp.lt.s32.totalorder %s37, 1
      %s421 = scalar_select %p420, %s37, 1
      %p422 = scmp.lt.s32.totalorder %s38, 2
      %s423 = scalar_select %p422, %s38, 2
      %s424 = smul.addr %s423, 2
      %s425 = smul.addr %s421, 6
      %s426 = sadd.s32 %s424, %s425
      %s427 = smul.addr %s426, 8
      %s428 = scalar_lea.vmem %s10, %s427
      %p429 = scmp.lt.s32.totalorder %s37, 1
      %s430 = scalar_select %p429, %s37, 1
      %p431 = scmp.lt.s32.totalorder %s38, 2
      %s432 = scalar_select %p431, %s38, 2
      %s433 = smul.addr %s432, 2
      %s434 = smul.addr %s430, 6
      %s435 = sadd.s32 %s433, %s434
      %s436 = smul.addr %s435, 8
      %s437 = scalar_lea.vmem %s11, %s436
      %s438 = sld [smem:[#allocation3 + %s37]]
      %s439 = sld [smem:[#allocation4 + %s37]]
      %v440 = vld [vmem:[%s410] sm:$0xff]
      %v441 = vld [vmem:[%s410 + $0x8] sm:$0xff]
      %v442 = vld [vmem:[%s419] sm:$0xff]
      %v443 = vld [vmem:[%s419 + $0x8] sm:$0xff]
      %v444 = vld [vmem:[%s4] sm:$0xff]
      %v445 = vld [vmem:[%s4 + $0x8] sm:$0xff]
      %v446 = vld [vmem:[%s5] sm:$0xff]
      %v447 = vld [vmem:[%s5 + $0x8] sm:$0xff]
      %v448 = vmul.f32 %v444, %v440
      %v449 = vmul.f32 %v445, %v441
      %v450 = vmul.f32 %v446, %v442
      %v451 = vmul.f32 %v447, %v443
      %v452 = vsub.f32 %v448, %v450
      %v453 = vsub.f32 %v449, %v451
      %v454 = vmul.f32 %v444, %v442
      %v455 = vmul.f32 %v445, %v443
      %v456 = vmul.f32 %v446, %v440
      %v457 = vmul.f32 %v447, %v441
      %v458 = vadd.f32 %v454, %v456
      %v459 = vadd.f32 %v455, %v457
      %v460 = vld [vmem:[%s8] sm:$0xff]
      %v461 = vld [vmem:[%s8 + $0x8] sm:$0xff]
      %v462 = vld [vmem:[%s9] sm:$0xff]
      %v463 = vld [vmem:[%s9 + $0x8] sm:$0xff]
      %v464 = vadd.f32 %v452, 0.0
      %v465 = vadd.f32 %v458, 0.0
      %v466 = vadd.f32 %v460, 0.0
      %v467 = vadd.f32 %v462, 0.0
      %469 = vrot.lane.b32.xlu0 %v452, 120
      %v470 = vpop.permute.xlu0 %469
      %v472 = vadd.f32 %v464, %v470
      %474 = vrot.lane.b32.xlu0 %v458, 120
      %v475 = vpop.permute.xlu0 %474
      %v477 = vadd.f32 %v465, %v475
      %479 = vrot.lane.b32.xlu0 %v460, 120
      %v480 = vpop.permute.xlu0 %479
      %v482 = vadd.f32 %v466, %v480
      %484 = vrot.lane.b32.xlu0 %v462, 120
      %v485 = vpop.permute.xlu0 %484
      %v487 = vadd.f32 %v467, %v485
      %v488 = vadd.f32 %v472, %v453
      %v489 = vadd.f32 %v477, %v459
      %v490 = vadd.f32 %v482, %v461
      %v491 = vadd.f32 %v487, %v463
      %493 = vrot.lane.b32.xlu0 %v453, 120
      %v494 = vpop.permute.xlu0 %493
      %v496 = vadd.f32 %v488, %v494
      %498 = vrot.lane.b32.xlu0 %v459, 120
      %v499 = vpop.permute.xlu0 %498
      %v501 = vadd.f32 %v489, %v499
      %503 = vrot.lane.b32.xlu0 %v461, 120
      %v504 = vpop.permute.xlu0 %503
      %v506 = vadd.f32 %v490, %v504
      %508 = vrot.lane.b32.xlu0 %v463, 120
      %v509 = vpop.permute.xlu0 %508
      %v511 = vadd.f32 %v491, %v509
      %v512 = vmul.f32 %v496, 0.25
      %v513 = vmul.f32 %v501, 0.25
      %v514 = vmul.f32 %v506, 0.25
      %v515 = vstv %s438
      %v516 = vadd.f32 %v514, %v515
      %v517 = vmul.f32 %v511, 0.25
      %v518 = vmul.f32 %v516, %v516
      %v519 = vmul.f32 %v517, %v517
      %v520 = vadd.f32 %v518, %v519
      %v521 = vmul.f32 %v512, %v516
      %v522 = vmul.f32 %v513, %v517
      %v523 = vadd.f32 %v521, %v522
      %v524 = vrcp.pop %v520
      %v525 = vmul.f32 %v523, %v524
      %v526 = vmul.f32 %v513, %v516
      %v527 = vmul.f32 %v512, %v517
      %v528 = vsub.f32 %v526, %v527
      %v529 = vmul.f32 %v528, %v524
      %v530 = vld [vmem:[%s6] sm:$0xff]
      %v531 = vld [vmem:[%s7] sm:$0xff]
      %v532 = vmul.f32 %v530, %v525
      %v533 = vmul.f32 %v531, %v529
      %v534 = vsub.f32 %v532, %v533
      %v535 = vmul.f32 %v530, %v529
      %v536 = vmul.f32 %v531, %v525
      %v537 = vadd.f32 %v535, %v536
      %v538 = vsub.f32 %v440, %v534
      %v539 = vstv %s439
      %v540 = vmul.f32 %v538, %v539
      %vm541 = vcmask 64512
      %542 = vst.msk [vmem:[%s428] sm:$0xff] %vm541, %v540
      %v543 = vsub.f32 %v442, %v537
      %v544 = vmul.f32 %v543, %v539
      %545 = vst.msk [vmem:[%s437] sm:$0xff] %vm541, %v544
      %v546 = vld [vmem:[%s6] sm:$0xff]
      %v547 = vld [vmem:[%s7] sm:$0xff]
      %549 = vrot.lane.b32.xlu0 %v525, 8
      %v550 = vpop.permute.xlu0 %549
      %v552 = vmul.f32 %v546, %v550
      %554 = vrot.lane.b32.xlu0 %v529, 8
      %v555 = vpop.permute.xlu0 %554
      %v557 = vmul.f32 %v547, %v555
      %v558 = vsub.f32 %v552, %v557
      %v559 = vmul.f32 %v546, %v555
      %v560 = vmul.f32 %v547, %v550
      %v561 = vadd.f32 %v559, %v560
      %v562 = vsub.f32 %v440, %v558
      %v563 = vmul.f32 %v562, %v539
      %vm564 = vcmask 130112
      %565 = vst.msk [vmem:[%s428] sm:$0xff] %vm564, %v563
      %v566 = vsub.f32 %v442, %v561
      %v567 = vmul.f32 %v566, %v539
      %568 = vst.msk [vmem:[%s437] sm:$0xff] %vm564, %v567
      %v569 = vld [vmem:[%s6 + $0x8] sm:$0xff]
      %v570 = vld [vmem:[%s7 + $0x8] sm:$0xff]
      %v571 = vmul.f32 %v569, %v525
      %v572 = vmul.f32 %v570, %v529
      %v573 = vsub.f32 %v571, %v572
      %v574 = vmul.f32 %v569, %v529
      %v575 = vmul.f32 %v570, %v525
      %v576 = vadd.f32 %v574, %v575
      %v577 = vsub.f32 %v441, %v573
      %v578 = vmul.f32 %v577, %v539
      %579 = vst.msk [vmem:[%s428 + $0x8] sm:$0xff] %vm541, %v578
      %v580 = vsub.f32 %v443, %v576
      %v581 = vmul.f32 %v580, %v539
      %582 = vst.msk [vmem:[%s437 + $0x8] sm:$0xff] %vm541, %v581
      %v583 = vld [vmem:[%s6 + $0x8] sm:$0xff]
      %v584 = vld [vmem:[%s7 + $0x8] sm:$0xff]
      %v585 = vmul.f32 %v583, %v550
      %v586 = vmul.f32 %v584, %v555
      %v587 = vsub.f32 %v585, %v586
      %v588 = vmul.f32 %v583, %v555
      %v589 = vmul.f32 %v584, %v550
      %v590 = vadd.f32 %v588, %v589
      %v591 = vsub.f32 %v441, %v587
      %v592 = vmul.f32 %v591, %v539
      %593 = vst.msk [vmem:[%s428 + $0x8] sm:$0xff] %vm564, %v592
      %v594 = vsub.f32 %v443, %v590
      %v595 = vmul.f32 %v594, %v539
      %596 = vst.msk [vmem:[%s437 + $0x8] sm:$0xff] %vm564, %v595
      %p597 = scmp.lt.s32.totalorder %s37, 1
      %s598 = scalar_select %p597, %s37, 1
      %p599 = scmp.lt.s32.totalorder %s38, 2
      %s600 = scalar_select %p599, %s38, 2
      %s601 = smul.addr %s600, 2
      %s602 = smul.addr %s598, 6
      %s603 = sadd.s32 %s601, %s602
      %s604 = smul.addr %s603, 8
      %s605 = scalar_lea.vmem %s10, %s604
      %p606 = scmp.lt.s32.totalorder %s37, 1
      %s607 = scalar_select %p606, %s37, 1
      %p608 = scmp.lt.s32.totalorder %s38, 2
      %s609 = scalar_select %p608, %s38, 2
      %s610 = smul.addr %s609, 2
      %s611 = smul.addr %s607, 6
      %s612 = sadd.s32 %s610, %s611
      %s613 = smul.addr %s612, 8
      %s614 = scalar_lea.vmem %s11, %s613
      // Predicated region
      $region53: #{datanet_forward.1} parent=51 // pred_check
        %p615 = pneg %p247
      $region54: #{datanet_forward.1} parent=51 // pred_check_branch
        %617 = sbr.rel (%p615) target = $region56
      $region55: #{datanet_forward.1} parent=51 // pred_region
        _
      $region56: #{datanet_forward.1} parent=51 // pred_fallthru
        _
      // Predicated region
      $region57: #{datanet_forward.1} parent=51 // pred_check
        %p618 = pneg %p275
      $region58: #{datanet_forward.1} parent=51 // pred_check_branch
        %620 = sbr.rel (%p618) target = $region60
      $region59: #{datanet_forward.1} parent=51 // pred_region
        _
      $region60: #{datanet_forward.1} parent=51 // pred_fallthru
        _
    $region52: #{datanet_forward.1} parent=5 // pred_fallthru
      _
    %p621 = scmp.le.s32.totalorder 2, %s28
    // Predicated region
    $region61: #{datanet_forward.1} parent=5 // pred_check
      %p622 = pneg %p621
    $region62: #{datanet_forward.1} parent=5 // pred_check_branch
      %624 = sbr.rel (%p622) target = $region64
    $region63: #{datanet_forward.1} parent=5 // pred_region
      %s625 = ssub.s32 %s28, 2
      // Predicated region
      $region65: #{datanet_forward.1} parent=63 // pred_check
        %p626 = pneg %p253
      $region66: #{datanet_forward.1} parent=63 // pred_check_branch
        %628 = sbr.rel (%p626) target = $region68
      $region67: #{datanet_forward.1} parent=63 // pred_region
        %p629 = scmp.lt.s32.totalorder %s39, 1
        %s630 = scalar_select %p629, %s39, 1
        %p631 = scmp.lt.s32.totalorder %s40, 2
        %s632 = scalar_select %p631, %s40, 2
        %s633 = smul.addr %s632, 2
        %s634 = smul.addr %s630, 6
        %s635 = sadd.s32 %s633, %s634
        %s636 = smul.addr %s635, 8
        %s637 = scalar_lea.vmem %s10, %s636
      $region68: #{datanet_forward.1} parent=63 // pred_fallthru
        _
      // Predicated region
      $region69: #{datanet_forward.1} parent=63 // pred_check
        %p638 = pneg %p281
      $region70: #{datanet_forward.1} parent=63 // pred_check_branch
        %640 = sbr.rel (%p638) target = $region72
      $region71: #{datanet_forward.1} parent=63 // pred_region
        %p641 = scmp.lt.s32.totalorder %s39, 1
        %s642 = scalar_select %p641, %s39, 1
        %p643 = scmp.lt.s32.totalorder %s40, 2
        %s644 = scalar_select %p643, %s40, 2
        %s645 = smul.addr %s644, 2
        %s646 = smul.addr %s642, 6
        %s647 = sadd.s32 %s645, %s646
        %s648 = smul.addr %s647, 8
        %s649 = scalar_lea.vmem %s11, %s648
      $region72: #{datanet_forward.1} parent=63 // pred_fallthru
        _
    $region64: #{datanet_forward.1} parent=5 // pred_fallthru
      _
  $region6: #{datanet_forward.1} parent=0 // loop_footer
    %s32 = sadd.s32 1, %s28
  $region7: #{datanet_forward.1} parent=0 // loop_footer_branch
    %27 = sbr.rel target = $region3
  $region8: #{datanet_forward.1} parent=0 // loop_exit
    _

</llo_original>
